<compile_context>
chip_gen: v6e
topology: v6e:2x2x1
jax: 0.10.0
libtpu: 0.0.40
codegen_flags: <defaults>
</compile_context>

<pallas_src>
import functools

import jax
import jax.numpy as jnp
from jax.experimental import pallas as pl
from jax.experimental.pallas import tpu as pltpu

LN_EPS = 1e-5
VMEM_LIMIT = 32 * 1024 * 1024   # safe scoped-VMEM budget on v5e/v6e/v7x


# ----------------------------- helpers -------------------------------------

def _pick_tile(dim, candidates):
    for c in candidates:
        if dim >= c and dim % c == 0:
            return c
    # TODO(synk): for awkward non-divisible dims at scale, pad to a multiple
    # of 128/256 instead of falling back to the full extent.
    return dim


# ----------------------------- matmul kernel --------------------------------

def _mm_kernel(*refs, activation, has_residual, has_ln, nk):
    """[LN(x)] @ w ; epilogue: + bias [-> QuickGELU] [+ residual]."""
    it = iter(refs)
    x_ref = next(it)
    if has_ln:
        g_ref = next(it)
        bln_ref = next(it)
    w_ref = next(it)
    b_ref = next(it)
    r_ref = next(it) if has_residual else None
    o_ref = next(it)
    acc_ref = next(it) if nk > 1 else None

    x = x_ref[...]
    if has_ln:
        # fp32 LayerNorm statistics (CLIP LayerNorm upcasts to float32).
        xf = x.astype(jnp.float32)
        mu = jnp.mean(xf, axis=-1, keepdims=True)
        xc = xf - mu
        var = jnp.mean(xc * xc, axis=-1, keepdims=True)
        xf = xc * jax.lax.rsqrt(var + LN_EPS)
        x = xf * g_ref[...] + bln_ref[...]
    x = x.astype(jnp.bfloat16)

    part = jnp.dot(x, w_ref[...], preferred_element_type=jnp.float32)

    def _epilogue(acc):
        acc = acc + b_ref[...].astype(jnp.float32)
        if activation == "quickgelu":
            acc = acc * (1.0 / (1.0 + jnp.exp(-1.702 * acc)))
        if has_residual:
            acc = acc + r_ref[...].astype(jnp.float32)
        o_ref[...] = acc.astype(o_ref.dtype)

    if nk == 1:
        _epilogue(part)
    else:
        @pl.when(pl.program_id(2) == 0)
        def _():
            acc_ref[...] = jnp.zeros_like(acc_ref)

        acc_ref[...] += part

        @pl.when(pl.program_id(2) == pl.num_programs(2) - 1)
        def _():
            _epilogue(acc_ref[...])


def matmul_bias(x, w, b, *, ln=None, activation=None, residual=None,
                out_dtype=jnp.bfloat16):
    """(M,K) @ (K,N) + b with optional fused LayerNorm(x), QuickGELU, residual.

    Weights arrive bf16; accumulation and all epilogue math are f32.
    When `ln` is given the full K lives in a single contraction tile so the
    x block can be normalized in-kernel before the dot.
    """
    M, K = x.shape
    K2, N = w.shape
    assert K == K2 and b.shape == (1, N)
    has_ln = ln is not None

    tm = _pick_tile(M, (256, 128, 64, 32, 16))
    tn = _pick_tile(N, (512, 256, 128))
    tk = K if has_ln else _pick_tile(K, (512, 256, 128))
    nk = K // tk
    grid = (M // tm, N // tn, nk)

    in_specs = [pl.BlockSpec((tm, tk), lambda i, j, k: (i, k))]
    args = [x]
    if has_ln:
        g, bln = ln
        in_specs += [pl.BlockSpec((1, K), lambda i, j, k: (0, 0)),
                     pl.BlockSpec((1, K), lambda i, j, k: (0, 0))]
        args += [g, bln]
    in_specs += [pl.BlockSpec((tk, tn), lambda i, j, k: (k, j)),
                 pl.BlockSpec((1, tn), lambda i, j, k: (0, j))]
    args += [w, b]
    if residual is not None:
        in_specs.append(pl.BlockSpec((tm, tn), lambda i, j, k: (i, j)))
        args.append(residual)

    kernel = functools.partial(_mm_kernel, activation=activation,
                               has_residual=residual is not None,
                               has_ln=has_ln, nk=nk)
    scratch = [] if nk == 1 else [pltpu.VMEM((tm, tn), jnp.float32)]
    return pl.pallas_call(
        kernel,
        out_shape=jax.ShapeDtypeStruct((M, N), out_dtype),
        grid=grid,
        in_specs=in_specs,
        out_specs=pl.BlockSpec((tm, tn), lambda i, j, k: (i, j)),
        scratch_shapes=scratch,
        compiler_params=pltpu.CompilerParams(
            dimension_semantics=("parallel", "parallel", "arbitrary"),
            vmem_limit_bytes=VMEM_LIMIT),
    )(*args)


# ----------------------------- attention kernel -----------------------------

def _attn_kernel(qkv_ref, o_ref, *, H):
    """One batch element per grid step: per-head softmax(q k^T) v.

    qkv_ref: (L, 3E) bf16, columns [q | k | v], q already scaled by Dh**-0.5.
    Output is written lane-dense as (L, E) bf16 (heads concatenated on lanes).
    """
    L, threeE = qkv_ref.shape
    E = threeE // 3
    Dh = E // H
    outs = []
    for h in range(H):
        q = qkv_ref[:, h * Dh:(h + 1) * Dh]                     # (L, Dh) bf16
        k = qkv_ref[:, E + h * Dh:E + (h + 1) * Dh]
        v = qkv_ref[:, 2 * E + h * Dh:2 * E + (h + 1) * Dh]
        s = jax.lax.dot_general(q, k, (((1,), (1,)), ((), ())),
                                preferred_element_type=jnp.float32)  # (L, L)
        s = s - jnp.max(s, axis=-1, keepdims=True)
        p = jnp.exp(s)
        p = p * pl.reciprocal(jnp.sum(p, axis=-1, keepdims=True), approx=True)
        outs.append(jnp.dot(p.astype(jnp.bfloat16), v,
                            preferred_element_type=jnp.float32))     # (L, Dh)
    o_ref[...] = jnp.concatenate(outs, axis=-1).astype(o_ref.dtype)


def attention(qkv, L, H):
    """qkv: (N*L, 3E) bf16, batch-major -> (N*L, E) bf16, batch-major."""
    # TODO(synk): no KV-length tiling (flash-style online softmax); the score
    # working set is bounded to one (L, L) head at a time, fine for moderate L.
    M, threeE = qkv.shape
    E = threeE // 3
    Nb = M // L
    spec_in = pl.BlockSpec((L, threeE), lambda b: (b, 0))
    spec_out = pl.BlockSpec((L, E), lambda b: (b, 0))
    return pl.pallas_call(
        functools.partial(_attn_kernel, H=H),
        out_shape=jax.ShapeDtypeStruct((M, E), jnp.bfloat16),
        grid=(Nb,),
        in_specs=[spec_in],
        out_specs=spec_out,
        compiler_params=pltpu.CompilerParams(
            dimension_semantics=("parallel",),
            vmem_limit_bytes=VMEM_LIMIT),
    )(qkv)


# ------------------------------- forward pass -------------------------------

def residual_attention_block(x2, p, L, H):
    # x = x + attn(ln_1(x))    (attn_mask=None; dropout/DropPath = identity)
    qkv = matmul_bias(x2, p['w_qkv'], p['b_qkv'], ln=(p['ln1_g'], p['ln1_b']),
                      out_dtype=jnp.bfloat16)                 # (N*L, 3E) bf16
    a = attention(qkv, L, H)                                  # (N*L, E)  bf16
    x2 = matmul_bias(a, p['w_out'], p['b_out'], residual=x2,
                     out_dtype=jnp.float32)
    # x = x + mlp(ln_2(x))   with mlp = Linear -> QuickGELU -> Linear
    h = matmul_bias(x2, p['w_fc'], p['b_fc'], ln=(p['ln2_g'], p['ln2_b']),
                    activation="quickgelu", out_dtype=jnp.bfloat16)
    x2 = matmul_bias(h, p['w_proj'], p['b_proj'], residual=x2,
                     out_dtype=jnp.float32)
    return x2


def transformer_forward(x, params):
    """x: (L, N, width) -> (L, N, width), matching Transformer.forward."""
    # TODO(synk): attn_mask (tensor or callable) is not supported; only the
    # default Transformer(attn_mask=None) path is implemented.
    L, N, E = x.shape
    H = params['heads']
    # Batch-major token layout (N*L, E): one transpose at entry/exit instead
    # of four reshapes/transposes per layer.
    x2 = jnp.transpose(x, (1, 0, 2)).reshape(N * L, E).astype(jnp.float32)
    for p in params['blocks']:
        x2 = residual_attention_block(x2, p, L, H)
    return jnp.transpose(x2.reshape(N, L, E), (1, 0, 2))


# ----------------------------- parameters -----------------------------------

def init_raw_params(key, width=128, layers=2, heads=4):
    keys = iter(jax.random.split(key, 12 * layers))

    def nrm(shape, std):
        return jax.random.normal(next(keys), shape, jnp.float32) * std

    blocks = []
    for _ in range(layers):
        blocks.append(dict(
            ln1_g=1.0 + 0.1 * nrm((width,), 1.0),
            ln1_b=0.1 * nrm((width,), 1.0),
            w_qkv=nrm((width, 3 * width), width ** -0.5),
            b_qkv=0.02 * nrm((3 * width,), 1.0),
            w_out=nrm((width, width), width ** -0.5),
            b_out=0.02 * nrm((width,), 1.0),
            ln2_g=1.0 + 0.1 * nrm((width,), 1.0),
            ln2_b=0.1 * nrm((width,), 1.0),
            w_fc=nrm((width, 4 * width), width ** -0.5),
            b_fc=0.02 * nrm((4 * width,), 1.0),
            w_proj=nrm((4 * width, width), (4 * width) ** -0.5),
            b_proj=0.02 * nrm((width,), 1.0),
        ))
    return blocks


def prepare_params(raw_blocks, heads):
    """Fold the head_dim**-0.5 q-scale into w/b_qkv, pre-cast weights to bf16,
    reshape biases / LN params to lane-dense (1, ·) f32."""
    width = raw_blocks[0]['w_qkv'].shape[0]
    q_scale = (width // heads) ** -0.5
    blocks = []
    for p in raw_blocks:
        w_qkv = p['w_qkv'].at[:, :width].multiply(q_scale)
        b_qkv = p['b_qkv'].at[:width].multiply(q_scale)
        blocks.append(dict(
            ln1_g=p['ln1_g'].reshape(1, -1),
            ln1_b=p['ln1_b'].reshape(1, -1),
            w_qkv=w_qkv.astype(jnp.bfloat16),
            b_qkv=b_qkv.reshape(1, -1).astype(jnp.float32),
            w_out=p['w_out'].astype(jnp.bfloat16),
            b_out=p['b_out'].reshape(1, -1),
            ln2_g=p['ln2_g'].reshape(1, -1),
            ln2_b=p['ln2_b'].reshape(1, -1),
            w_fc=p['w_fc'].astype(jnp.bfloat16),
            b_fc=p['b_fc'].reshape(1, -1),
            w_proj=p['w_proj'].astype(jnp.bfloat16),
            b_proj=p['b_proj'].reshape(1, -1),
        ))
    return dict(blocks=blocks, heads=heads)


# ----------------------------- pure-JAX reference ---------------------------

def reference_forward(x, raw_blocks, heads):
    L, N, E = x.shape
    H = heads
    Dh = E // H

    def ln(t, g, b):
        mu = t.mean(-1, keepdims=True)
        var = ((t - mu) ** 2).mean(-1, keepdims=True)
        return (t - mu) / jnp.sqrt(var + LN_EPS) * g + b

    def split_heads(t):
        return t.reshape(L, N, H, Dh).transpose(1, 2, 0, 3)     # (N,H,L,Dh)

    h2 = x
    for p in raw_blocks:
        y = ln(h2, p['ln1_g'], p['ln1_b'])
        qkv = y @ p['w_qkv'] + p['b_qkv']
        q, k, v = map(split_heads, jnp.split(qkv, 3, axis=-1))
        s = jnp.einsum('nhqd,nhkd->nhqk', q, k) * (Dh ** -0.5)
        a = jax.nn.softmax(s, axis=-1)
        o = jnp.einsum('nhqk,nhkd->nhqd', a, v)
        o = o.transpose(2, 0, 1, 3).reshape(L, N, E)
        h2 = h2 + (o @ p['w_out'] + p['b_out'])
        y = ln(h2, p['ln2_g'], p['ln2_b'])
        y = y @ p['w_fc'] + p['b_fc']
        y = y * jax.nn.sigmoid(1.702 * y)
        h2 = h2 + (y @ p['w_proj'] + p['b_proj'])
    return h2


if __name__ == "__main__":
    key = jax.random.PRNGKey(0)
    pkey, xkey = jax.random.split(key)
    # Small Transformer: width=128, layers=2, heads=4; input (L=8, N=2, width).
    width, layers, heads = 128, 2, 4
    L, N = 8, 2
    raw = init_raw_params(pkey, width=width, layers=layers, heads=heads)
    params = prepare_params(raw, heads=heads)
    x = jax.random.normal(xkey, (L, N, width), jnp.float32)

    out = transformer_forward(x, params)
    out = jax.block_until_ready(out)

    assert out.shape == (L, N, width), out.shape
    assert bool(jnp.all(jnp.isfinite(out)))
    ref = reference_forward(x, raw, heads)
    rel = float(jnp.linalg.norm(out - ref) / jnp.linalg.norm(ref))
    assert rel < 5e-2, f"relative error too large: {rel}"
    print("KERNEL_OK")
</pallas_src>

<mosaic_0001>
module attributes {stable_mosaic.version = 11 : i64} {
  func.func @_mm_kernel(%arg0: i32, %arg1: i32, %arg2: i32, %arg3: memref<16x128xf32, #tpu.memory_space<vmem>>, %arg4: memref<1x128xf32, #tpu.memory_space<vmem>>, %arg5: memref<1x128xf32, #tpu.memory_space<vmem>>, %arg6: memref<128x128xbf16, #tpu.memory_space<vmem>>, %arg7: memref<1x128xf32, #tpu.memory_space<vmem>>, %arg8: memref<16x128xbf16, #tpu.memory_space<vmem>>) attributes {dimension_semantics = [#tpu.dimension_semantics<parallel>, #tpu.dimension_semantics<parallel>, #tpu.dimension_semantics<arbitrary>], iteration_bounds = array<i64: 1, 3, 1>, scalar_prefetch = 0 : i64, scratch_operands = 0 : i64, tpu.core_type = #tpu.core_type<tc>, window_params = [{transform_indices = @transform_0, window_bounds = array<i64: 16, 128>}, {pipeline_mode = #tpu.pipeline_mode<synchronous>, transform_indices = @transform_1, window_bounds = array<i64: 1, 128>}, {pipeline_mode = #tpu.pipeline_mode<synchronous>, transform_indices = @transform_2, window_bounds = array<i64: 1, 128>}, {transform_indices = @transform_3, window_bounds = array<i64: 128, 128>}, {transform_indices = @transform_4, window_bounds = array<i64: 1, 128>}, {transform_indices = @transform_5, window_bounds = array<i64: 16, 128>}]} {
    %c0 = arith.constant 0 : index
    %c0_0 = arith.constant 0 : index
    %0 = vector.load %arg3[%c0, %c0_0] : memref<16x128xf32, #tpu.memory_space<vmem>>, vector<16x128xf32>
    %cst = arith.constant dense<0.000000e+00> : vector<16xf32>
    %1 = vector.multi_reduction <add>, %0, %cst [1] : vector<16x128xf32> to vector<16xf32>
    %2 = vector.shape_cast %1 : vector<16xf32> to vector<16x1xf32>
    %cst_1 = arith.constant 1.280000e+02 : f32
    %3 = vector.broadcast %cst_1 : f32 to vector<16x1xf32>
    %4 = arith.divf %2, %3 : vector<16x1xf32>
    %5 = vector.broadcast %4 : vector<16x1xf32> to vector<16x128xf32>
    %6 = arith.subf %0, %5 : vector<16x128xf32>
    %7 = arith.mulf %6, %6 : vector<16x128xf32>
    %cst_2 = arith.constant dense<0.000000e+00> : vector<16xf32>
    %8 = vector.multi_reduction <add>, %7, %cst_2 [1] : vector<16x128xf32> to vector<16xf32>
    %9 = vector.shape_cast %8 : vector<16xf32> to vector<16x1xf32>
    %cst_3 = arith.constant 1.280000e+02 : f32
    %10 = vector.broadcast %cst_3 : f32 to vector<16x1xf32>
    %11 = arith.divf %9, %10 : vector<16x1xf32>
    %cst_4 = arith.constant 9.99999974E-6 : f32
    %12 = vector.broadcast %cst_4 : f32 to vector<16x1xf32>
    %13 = arith.addf %11, %12 : vector<16x1xf32>
    %14 = math.rsqrt %13 : vector<16x1xf32>
    %15 = vector.broadcast %14 : vector<16x1xf32> to vector<16x128xf32>
    %16 = arith.mulf %6, %15 : vector<16x128xf32>
    %c0_5 = arith.constant 0 : index
    %c0_6 = arith.constant 0 : index
    %17 = vector.load %arg4[%c0_5, %c0_6] : memref<1x128xf32, #tpu.memory_space<vmem>>, vector<1x128xf32>
    %18 = vector.broadcast %17 : vector<1x128xf32> to vector<16x128xf32>
    %19 = arith.mulf %16, %18 : vector<16x128xf32>
    %c0_7 = arith.constant 0 : index
    %c0_8 = arith.constant 0 : index
    %20 = vector.load %arg5[%c0_7, %c0_8] : memref<1x128xf32, #tpu.memory_space<vmem>>, vector<1x128xf32>
    %21 = vector.broadcast %20 : vector<1x128xf32> to vector<16x128xf32>
    %22 = arith.addf %19, %21 : vector<16x128xf32>
    %23 = arith.truncf %22 : vector<16x128xf32> to vector<16x128xbf16>
    %c0_9 = arith.constant 0 : index
    %c0_10 = arith.constant 0 : index
    %24 = vector.load %arg6[%c0_9, %c0_10] : memref<128x128xbf16, #tpu.memory_space<vmem>>, vector<128x128xbf16>
    %cst_11 = arith.constant dense<0.000000e+00> : vector<16x128xf32>
    %25 = tpu.matmul %23, %24, %cst_11 {dimension_numbers = #tpu.dot_dimension_numbers<[1], [0], [0], [1], [0, 0, 1, 1], [], []>} : vector<16x128xbf16>, vector<128x128xbf16>, vector<16x128xf32> -> vector<16x128xf32>
    %c0_12 = arith.constant 0 : index
    %c0_13 = arith.constant 0 : index
    %26 = vector.load %arg7[%c0_12, %c0_13] : memref<1x128xf32, #tpu.memory_space<vmem>>, vector<1x128xf32>
    %27 = vector.broadcast %26 : vector<1x128xf32> to vector<16x128xf32>
    %28 = arith.addf %25, %27 : vector<16x128xf32>
    %29 = arith.truncf %28 : vector<16x128xf32> to vector<16x128xbf16>
    %c0_14 = arith.constant 0 : index
    %c0_15 = arith.constant 0 : index
    %30 = vector.load %arg8[%c0_14, %c0_15] : memref<16x128xbf16, #tpu.memory_space<vmem>>, vector<16x128xbf16>
    tpu.vector_store %arg8[%c0_14, %c0_15], %29 {strides = array<i32>} : memref<16x128xbf16, #tpu.memory_space<vmem>>, vector<16x128xbf16>,
    return
  }
  func.func @transform_0(%arg0: i32, %arg1: i32, %arg2: i32) -> (i32, i32) {
    %c0_i32 = arith.constant 0 : i32
    return %arg0, %arg2 : i32, i32
  }
  func.func @transform_1(%arg0: i32, %arg1: i32, %arg2: i32) -> (i32, i32) {
    %c0_i32 = arith.constant 0 : i32
    %c0_i32_0 = arith.constant 0 : i32
    %c0_i32_1 = arith.constant 0 : i32
    return %c0_i32, %c0_i32_0 : i32, i32
  }
  func.func @transform_2(%arg0: i32, %arg1: i32, %arg2: i32) -> (i32, i32) {
    %c0_i32 = arith.constant 0 : i32
    %c0_i32_0 = arith.constant 0 : i32
    %c0_i32_1 = arith.constant 0 : i32
    return %c0_i32, %c0_i32_0 : i32, i32
  }
  func.func @transform_3(%arg0: i32, %arg1: i32, %arg2: i32) -> (i32, i32) {
    %c0_i32 = arith.constant 0 : i32
    return %arg2, %arg1 : i32, i32
  }
  func.func @transform_4(%arg0: i32, %arg1: i32, %arg2: i32) -> (i32, i32) {
    %c0_i32 = arith.constant 0 : i32
    %c0_i32_0 = arith.constant 0 : i32
    return %c0_i32, %arg1 : i32, i32
  }
  func.func @transform_5(%arg0: i32, %arg1: i32, %arg2: i32) -> (i32, i32) {
    %c0_i32 = arith.constant 0 : i32
    return %arg0, %arg1 : i32, i32
  }
}

</mosaic_0001>

<llo_original>
// kernel: tpu_custom_call.1
$region0: #{tpu_custom_call.1}
  #allocation0 [shape = 'u32[]', space=smem, size = 0x4, offset = 0x4, fixed_abs, tag = 'smem constant byte address 0x4 - core index']
  #allocation1 [shape = 'u32[144,128]{1,0:T(1,128)}', space=vmem, size = 0x12000, scoped, tag = 'internal scratch']
  %s0 = inlined_call_operand.hbm [shape: f32[16,128], index: 0, kind: input, shape index: {}]
  %s1 = inlined_call_operand.vmem [shape: f32[1,128], index: 1, kind: input, shape index: {}]
  %s2 = inlined_call_operand.vmem [shape: f32[1,128], index: 2, kind: input, shape index: {}]
  %s3 = inlined_call_operand.hbm [shape: bf16[128,384], index: 3, kind: input, shape index: {}]
  %s4 = inlined_call_operand.vmem [shape: f32[1,384], index: 4, kind: input, shape index: {}]
  %s5 = inlined_call_operand.hbm [shape: bf16[16,384], index: 5, kind: output, shape index: {}]
  %s6 = sld [smem:[#allocation0]]
  $region61: #{tpu_custom_call.1} parent=0
    _
  %s8 = ssub.s32 1, %s6
  %s9 = scalar_select 0, %s8, %s6
  $region1: #{tpu_custom_call.1} parent=0
    #allocation2 [shape = 'u8[8192]{0}', space=vmem, size = 0x2000, scoped, tag = 'input window, operand 0, single buffered']
    #allocation3 [shape = 's32[2]{0}', space=sflag, size = 0x8, scoped, tag = 'scoped memory for tpu_custom_call.1']
    #allocation4 [shape = 's32[2]{0}', space=sflag, size = 0x8, scoped, tag = 'scoped memory for tpu_custom_call.1']
    #allocation5 [shape = 'u8[65536]{0}', space=vmem, size = 0x10000, scoped, tag = 'input window, operand 3']
    #allocation6 [shape = 's32[2]{0}', space=sflag, size = 0x8, scoped, tag = 'scoped memory for tpu_custom_call.1']
    #allocation7 [shape = 'u8[8192]{0}', space=vmem, size = 0x2000, scoped, tag = 'output window, operand 0']
    %10 = vsyncpa [#allocation3], 0
    %11 = vsyncpa [#allocation6], 0
    %s12 = scalar_lea.sflag [#allocation6], 1
    %13 = vsyncpa %s12, 0
    %14 = vsyncpa [#allocation4], 0
    %s15 = scalar_lea.sflag [#allocation4], 1
    %16 = vsyncpa %s15, 0
    loop: start=0, step=1, limit=5
    $region2: #{tpu_custom_call.1} parent=1 // loop_pre_header
      _
    $region3: #{tpu_custom_call.1} parent=1 // loop_header
      %s18 = sphi 0, %s22
      %p19 = scmp.ge.s32.totalorder %s18, 5
      %s25 = sphi 0, %s44
      %s26 = sphi 0, %s40
      %s27 = sphi 0, %s36
      %s28 = sphi 0, %s25
      %s29 = sphi 0, %s26
      %s30 = sphi 0, %s27
      %s31 = sphi 0, %s28
      %s32 = sphi 0, %s29
      %s33 = sphi 0, %s30
      %s49 = sphi 0, %s51
      %s52 = sphi 0, %s49
      %s53 = sphi 0, %s52
      %s69 = sphi 0, %s53
      %s73 = sphi 0, %s73
      %s75 = sphi 0, %s73
      %s76 = sphi 0, %s75
      %s90 = sphi 0, %s76
      %s94 = sphi 0, %s94
      %s96 = sphi 0, %s94
      %s97 = sphi 0, %s96
      %s111 = sphi 0, %s97
      %s119 = sphi 0, %s121
      %s122 = sphi 0, %s119
      %s123 = sphi 0, %s122
      %s139 = sphi 0, %s123
      %s145 = sphi 0, %s147
      %s148 = sphi 0, %s145
      %s149 = sphi 0, %s148
      %s165 = sphi 0, %s149
      %s173 = sphi 0, %s175
      %s176 = sphi 0, %s173
      %s177 = sphi 0, %s176
      %s193 = sphi 0, %s177
    $region4: #{tpu_custom_call.1} parent=1 // loop_header_branch
      %21 = sbr.rel (%p19) target = $region8
    $region5: #{tpu_custom_call.1} parent=1 // loop_body
      %s23 = ssub.s32 %s18, 1
      %s24 = ssub.s32 %s18, 2
      %s34 = sadd.s32 1, %s27
      %p35 = scmp.ge.s32.totalorder %s34, 1
      %s36 = scalar_select %p35, 0, %s34
      %s37 = sadd.s32 1, %s26
      %s38 = scalar_select %p35, %s37, %s26
      %p39 = scmp.ge.s32.totalorder %s38, 3
      %s40 = scalar_select %p39, 0, %s38
      %s41 = sadd.s32 1, %s25
      %s42 = scalar_select %p39, %s41, %s25
      %p43 = scmp.ge.s32.totalorder %s42, 1
      %s44 = scalar_select %p43, 0, %s42
      %s45 = ssub.s32 %s25, %s44
      %s46 = ssub.s32 %s27, %s36
      %s47 = sor.u32 %s45, %s46
      %p48 = scmp.eq.s32.totalorder %s47, 0
      %s50 = sadd.s32 %s49, 1
      %s51 = scalar_select %p48, %s49, %s50
      %p54 = pneg %p48
      %p55 = scmp.eq.s32.totalorder %s18, 2
      %p56 = por %p54, %p55
      %p57 = scmp.ne.s32.totalorder %s49, %s52
      %p58 = scmp.eq.s32.totalorder %s18, 0
      %p59 = por %p57, %p58
      %p60 = scmp.ne.s32.totalorder %s49, %s52
      %p61 = scmp.eq.s32.totalorder %s23, 2
      %p62 = por %p60, %p61
      %p63 = scmp.ne.s32.totalorder %s52, %s53
      %p64 = scmp.eq.s32.totalorder %s23, 0
      %p65 = por %p63, %p64
      %p66 = scmp.ne.s32.totalorder %s52, %s53
      %p67 = scmp.eq.s32.totalorder %s24, 2
      %p68 = por %p66, %p67
      %p70 = scmp.ne.s32.totalorder %s53, %s69
      %p71 = scmp.eq.s32.totalorder %s24, 0
      %p72 = por %p70, %p71
      %s74 = sadd.s32 %s73, 1
      %p77 = scmp.eq.s32.totalorder %s18, 2
      %p78 = scmp.ne.s32.totalorder %s73, %s75
      %p79 = scmp.eq.s32.totalorder %s18, 0
      %p80 = por %p78, %p79
      %p81 = scmp.ne.s32.totalorder %s73, %s75
      %p82 = scmp.eq.s32.totalorder %s23, 2
      %p83 = por %p81, %p82
      %p84 = scmp.ne.s32.totalorder %s75, %s76
      %p85 = scmp.eq.s32.totalorder %s23, 0
      %p86 = por %p84, %p85
      %p87 = scmp.ne.s32.totalorder %s75, %s76
      %p88 = scmp.eq.s32.totalorder %s24, 2
      %p89 = por %p87, %p88
      %p91 = scmp.ne.s32.totalorder %s76, %s90
      %p92 = scmp.eq.s32.totalorder %s24, 0
      %p93 = por %p91, %p92
      %s95 = sadd.s32 %s94, 1
      %p98 = scmp.eq.s32.totalorder %s18, 2
      %p99 = scmp.ne.s32.totalorder %s94, %s96
      %p100 = scmp.eq.s32.totalorder %s18, 0
      %p101 = por %p99, %p100
      %p102 = scmp.ne.s32.totalorder %s94, %s96
      %p103 = scmp.eq.s32.totalorder %s23, 2
      %p104 = por %p102, %p103
      %p105 = scmp.ne.s32.totalorder %s96, %s97
      %p106 = scmp.eq.s32.totalorder %s23, 0
      %p107 = por %p105, %p106
      %p108 = scmp.ne.s32.totalorder %s96, %s97
      %p109 = scmp.eq.s32.totalorder %s24, 2
      %p110 = por %p108, %p109
      %p112 = scmp.ne.s32.totalorder %s97, %s111
      %p113 = scmp.eq.s32.totalorder %s24, 0
      %p114 = por %p112, %p113
      %s115 = ssub.s32 %s27, %s36
      %s116 = ssub.s32 %s26, %s40
      %s117 = sor.u32 %s115, %s116
      %p118 = scmp.eq.s32.totalorder %s117, 0
      %s120 = sadd.s32 %s119, 1
      %s121 = scalar_select %p118, %s119, %s120
      %p124 = pneg %p118
      %p125 = scmp.eq.s32.totalorder %s18, 2
      %p126 = por %p124, %p125
      %p127 = scmp.ne.s32.totalorder %s119, %s122
      %p128 = scmp.eq.s32.totalorder %s18, 0
      %p129 = por %p127, %p128
      %p130 = scmp.ne.s32.totalorder %s119, %s122
      %p131 = scmp.eq.s32.totalorder %s23, 2
      %p132 = por %p130, %p131
      %p133 = scmp.ne.s32.totalorder %s122, %s123
      %p134 = scmp.eq.s32.totalorder %s23, 0
      %p135 = por %p133, %p134
      %p136 = scmp.ne.s32.totalorder %s122, %s123
      %p137 = scmp.eq.s32.totalorder %s24, 2
      %p138 = por %p136, %p137
      %p140 = scmp.ne.s32.totalorder %s123, %s139
      %p141 = scmp.eq.s32.totalorder %s24, 0
      %p142 = por %p140, %p141
      %s143 = ssub.s32 %s26, %s40
      %p144 = scmp.eq.s32.totalorder %s143, 0
      %s146 = sadd.s32 %s145, 1
      %s147 = scalar_select %p144, %s145, %s146
      %p150 = pneg %p144
      %p151 = scmp.eq.s32.totalorder %s18, 2
      %p152 = por %p150, %p151
      %p153 = scmp.ne.s32.totalorder %s145, %s148
      %p154 = scmp.eq.s32.totalorder %s18, 0
      %p155 = por %p153, %p154
      %p156 = scmp.ne.s32.totalorder %s145, %s148
      %p157 = scmp.eq.s32.totalorder %s23, 2
      %p158 = por %p156, %p157
      %p159 = scmp.ne.s32.totalorder %s148, %s149
      %p160 = scmp.eq.s32.totalorder %s23, 0
      %p161 = por %p159, %p160
      %p162 = scmp.ne.s32.totalorder %s148, %s149
      %p163 = scmp.eq.s32.totalorder %s24, 2
      %p164 = por %p162, %p163
      %p166 = scmp.ne.s32.totalorder %s149, %s165
      %p167 = scmp.eq.s32.totalorder %s24, 0
      %p168 = por %p166, %p167
      %s169 = ssub.s32 %s25, %s44
      %s170 = ssub.s32 %s26, %s40
      %s171 = sor.u32 %s169, %s170
      %p172 = scmp.eq.s32.totalorder %s171, 0
      %s174 = sadd.s32 %s173, 1
      %s175 = scalar_select %p172, %s173, %s174
      %p178 = pneg %p172
      %p179 = scmp.eq.s32.totalorder %s18, 2
      %p180 = por %p178, %p179
      %p181 = scmp.ne.s32.totalorder %s173, %s176
      %p182 = scmp.eq.s32.totalorder %s18, 0
      %p183 = por %p181, %p182
      %p184 = scmp.ne.s32.totalorder %s173, %s176
      %p185 = scmp.eq.s32.totalorder %s23, 2
      %p186 = por %p184, %p185
      %p187 = scmp.ne.s32.totalorder %s176, %s177
      %p188 = scmp.eq.s32.totalorder %s23, 0
      %p189 = por %p187, %p188
      %p190 = scmp.ne.s32.totalorder %s176, %s177
      %p191 = scmp.eq.s32.totalorder %s24, 2
      %p192 = por %p190, %p191
      %p194 = scmp.ne.s32.totalorder %s177, %s193
      %p195 = scmp.eq.s32.totalorder %s24, 0
      %p196 = por %p194, %p195
      %p197 = scmp.le.s32.totalorder 1, %s18
      %p198 = scmp.lt.s32.totalorder %s18, 4
      %p199 = pnand %p197, %p198
      %p200 = pneg %p199
      // Predicated region
      $region9: #{tpu_custom_call.1} parent=5 // pred_check
        _
      $region10: #{tpu_custom_call.1} parent=5 // pred_check_branch
        %202 = sbr.rel (%p199) target = $region12
      $region11: #{tpu_custom_call.1} parent=5 // pred_region
        %s203 = ssub.s32 %s18, 1
        // Predicated region
        $region13: #{tpu_custom_call.1} parent=11 // pred_check
          %p204 = pneg %p65
        $region14: #{tpu_custom_call.1} parent=11 // pred_check_branch
          %206 = sbr.rel (%p204) target = $region16
        $region15: #{tpu_custom_call.1} parent=11 // pred_region
          %s207 = smul.u32 2, %s28
          %s209 = ssub.s32 256, 256
          %210 = vsyncadd [#allocation3], %s209
          %s211 = sadd.s32 %s30, %s207
          %s212 = smul.addr %s211, 128
          %s213 = scalar_lea.hbm %s0, %s212
          %s214 = sshll.u32 [#allocation2], 4
          %s215 = int_to_ptr.vmem [resolvable:$true] %s214
          %220 = dma.hbm_to_vmem [thread:$0]  %s213, 256, %s215, [#allocation3], 128, 128, 8
        $region16: #{tpu_custom_call.1} parent=11 // pred_fallthru
          _
        // Predicated region
        $region17: #{tpu_custom_call.1} parent=11 // pred_check
          %p221 = pneg %p86
        $region18: #{tpu_custom_call.1} parent=11 // pred_check_branch
          %223 = sbr.rel (%p221) target = $region20
        $region19: #{tpu_custom_call.1} parent=11 // pred_region
          _
        $region20: #{tpu_custom_call.1} parent=11 // pred_fallthru
          _
        // Predicated region
        $region21: #{tpu_custom_call.1} parent=11 // pred_check
          %p224 = pneg %p107
        $region22: #{tpu_custom_call.1} parent=11 // pred_check_branch
          %226 = sbr.rel (%p224) target = $region24
        $region23: #{tpu_custom_call.1} parent=11 // pred_region
          _
        $region24: #{tpu_custom_call.1} parent=11 // pred_fallthru
          _
      $region12: #{tpu_custom_call.1} parent=5 // pred_fallthru
        _
      %p227 = scmp.lt.s32.totalorder %s18, 3
      // Predicated region
      $region25: #{tpu_custom_call.1} parent=5 // pred_check
        %p228 = pneg %p227
      $region26: #{tpu_custom_call.1} parent=5 // pred_check_branch
        %230 = sbr.rel (%p228) target = $region28
      $region27: #{tpu_custom_call.1} parent=5 // pred_region
        // Predicated region
        $region29: #{tpu_custom_call.1} parent=27 // pred_check
          %p231 = pneg %p129
        $region30: #{tpu_custom_call.1} parent=27 // pred_check_branch
          %233 = sbr.rel (%p231) target = $region32
        $region31: #{tpu_custom_call.1} parent=27 // pred_region
          %s234 = sand.u32 %s119, 1
          %s235 = scalar_lea.sflag [#allocation6], %s234
          %s236 = sand.u32 %s119, 1
          %s237 = smul.addr %s236, 64
          %s238 = scalar_lea.vmem [#allocation5], %s237
          %s239 = smul.u32 16, %s27
          %s241 = ssub.s32 1024, 1024
          %242 = vsyncadd %s235, %s241
          %s243 = smul.addr %s239, 3
          %s244 = sadd.s32 %s26, %s243
          %s245 = smul.addr %s244, 64
          %s246 = scalar_lea.hbm %s3, %s245
          %s247 = sshll.u32 %s238, 4
          %s248 = int_to_ptr.vmem [resolvable:$true] %s247
          %253 = dma.hbm_to_vmem [thread:$0]  %s246, 1024, %s248, %s235, 192, 64, 4
        $region32: #{tpu_custom_call.1} parent=27 // pred_fallthru
          _
        // Predicated region
        $region33: #{tpu_custom_call.1} parent=27 // pred_check
          %p254 = pneg %p155
        $region34: #{tpu_custom_call.1} parent=27 // pred_check_branch
          %256 = sbr.rel (%p254) target = $region36
        $region35: #{tpu_custom_call.1} parent=27 // pred_region
          %p257 = scmp.lt.s32.totalorder %s26, 2
          %s258 = scalar_select %p257, %s26, 2
          %s259 = scalar_lea.vmem %s4, %s258
        $region36: #{tpu_custom_call.1} parent=27 // pred_fallthru
          _
      $region28: #{tpu_custom_call.1} parent=5 // pred_fallthru
        _
      %p260 = scmp.le.s32.totalorder 1, %s18
      %p261 = scmp.lt.s32.totalorder %s18, 4
      %p262 = pnand %p260, %p261
      %p263 = pneg %p262
      // Predicated region
      $region37: #{tpu_custom_call.1} parent=5 // pred_check
        _
      $region38: #{tpu_custom_call.1} parent=5 // pred_check_branch
        %265 = sbr.rel (%p262) target = $region40
      $region39: #{tpu_custom_call.1} parent=5 // pred_region
        %s266 = ssub.s32 %s18, 1
        // Predicated region
        $region41: #{tpu_custom_call.1} parent=39 // pred_check
          %p267 = pneg %p65
        $region42: #{tpu_custom_call.1} parent=39 // pred_check_branch
          %269 = sbr.rel (%p267) target = $region44
        $region43: #{tpu_custom_call.1} parent=39 // pred_region
          %270 = dma.done [#allocation3], 256
        $region44: #{tpu_custom_call.1} parent=39 // pred_fallthru
          _
        %s271 = sand.u32 %s122, 1
        %s272 = scalar_lea.sflag [#allocation6], %s271
        %s273 = sand.u32 %s122, 1
        %s274 = smul.addr %s273, 64
        %s275 = scalar_lea.vmem [#allocation5], %s274
        // Predicated region
        $region45: #{tpu_custom_call.1} parent=39 // pred_check
          %p276 = pneg %p135
        $region46: #{tpu_custom_call.1} parent=39 // pred_check_branch
          %278 = sbr.rel (%p276) target = $region48
        $region47: #{tpu_custom_call.1} parent=39 // pred_region
          %279 = dma.done %s272, 1024
        $region48: #{tpu_custom_call.1} parent=39 // pred_fallthru
          _
        %p280 = pneg %p65
        %p281 = pneg %p62
        %p282 = pneg %p86
        %p283 = pneg %p83
        %p284 = pneg %p107
        %p285 = pneg %p104
        %s286 = sand.u32 %s122, 1
        %s287 = scalar_lea.sflag [#allocation6], %s286
        %s288 = sand.u32 %s122, 1
        %s289 = smul.addr %s288, 64
        %s290 = scalar_lea.vmem [#allocation5], %s289
        %p291 = pneg %p135
        %p292 = pneg %p132
        %p293 = scmp.lt.s32.totalorder %s29, 2
        %s294 = scalar_select %p293, %s29, 2
        %s295 = scalar_lea.vmem %s4, %s294
        %p296 = pneg %p161
        %p297 = pneg %p158
        %p298 = pneg %p189
        %p299 = pneg %p186
        %s300 = sand.u32 %s176, 1
        %s301 = scalar_lea.sflag [#allocation4], %s300
        %s302 = sand.u32 %s176, 1
        %s303 = smul.addr %s302, 8
        %s304 = scalar_lea.vmem [#allocation7], %s303
        %s305 = smul.u32 2, %s28
        %s306 = smul.u32 16, %s30
        %p307 = scmp.lt.s32.totalorder %s29, 2
        %s308 = scalar_select %p307, %s29, 2
        %s309 = scalar_lea.vmem %s4, %s308
        %s310 = smul.u32 2, %s28
        %v312 = vld [vmem:[#allocation2] sm:$0xff]
        %v313 = vld [vmem:[#allocation2 + $0x8] sm:$0xff]
        %314 = vadd.xlane.f32.xlu0 %v312
        %v315 = vpop.xlane.xlu0 %314
        %316 = vadd.xlane.f32.xlu0 %v313
        %v317 = vpop.xlane.xlu0 %316
        %v318 = vrcp.pop 128.0
        %v319 = vmul.f32 %v315, %v318
        %v320 = vmul.f32 %v317, %v318
        %v321 = vsub.f32 %v312, %v319
        %v322 = vsub.f32 %v313, %v320
        %v323 = vmul.f32 %v321, %v321
        %v324 = vmul.f32 %v322, %v322
        %325 = vadd.xlane.f32.xlu0 %v323
        %v326 = vpop.xlane.xlu0 %325
        %327 = vadd.xlane.f32.xlu0 %v324
        %v328 = vpop.xlane.xlu0 %327
        %v329 = vmul.f32 %v326, %v318
        %v330 = vmul.f32 %v328, %v318
        %v331 = vadd.f32 %v329, 1e-05
        %v332 = vadd.f32 %v330, 1e-05
        %v333 = vrsqrt.pop %v331
        %v334 = vrsqrt.pop %v332
        %v335 = vmul.f32 %v321, %v333
        %v336 = vmul.f32 %v322, %v334
        %v337 = vld [vmem:[%s1] sm:$0x1]
        %v339 = vlaneseq
        %v340 = vshrl.u32 %v339, 7
        %v341 = vsub.s32 0, %v340
        %v342 = vrot.slane %v337, %v341
        %v344 = vmul.f32 %v335, %v342
        %v345 = vmul.f32 %v336, %v342
        %v346 = vld [vmem:[%s2] sm:$0x1]
        %v348 = vlaneseq
        %v349 = vshrl.u32 %v348, 7
        %v350 = vsub.s32 0, %v349
        %v351 = vrot.slane %v346, %v350
        %v353 = vadd.f32 %v344, %v351
        %v354 = vadd.f32 %v345, %v351
        %v355 = vpack.c.bf16 %v354, %v353
        %v356 = vld [vmem:[%s275] sm:$0xf]
        %v357 = vld [vmem:[%s275 + $0x4] sm:$0xf]
        %v358 = vld [vmem:[%s275 + $0x8] sm:$0xf]
        %v359 = vld [vmem:[%s275 + $0xc] sm:$0xf]
        %v360 = vld [vmem:[%s275 + $0x10] sm:$0xf]
        %v361 = vld [vmem:[%s275 + $0x14] sm:$0xf]
        %v362 = vld [vmem:[%s275 + $0x18] sm:$0xf]
        %v363 = vld [vmem:[%s275 + $0x1c] sm:$0xf]
        %v364 = vld [vmem:[%s275 + $0x20] sm:$0xf]
        %v365 = vld [vmem:[%s275 + $0x24] sm:$0xf]
        %v366 = vld [vmem:[%s275 + $0x28] sm:$0xf]
        %v367 = vld [vmem:[%s275 + $0x2c] sm:$0xf]
        %v368 = vld [vmem:[%s275 + $0x30] sm:$0xf]
        %v369 = vld [vmem:[%s275 + $0x34] sm:$0xf]
        %v370 = vld [vmem:[%s275 + $0x38] sm:$0xf]
        %v371 = vld [vmem:[%s275 + $0x3c] sm:$0xf]
        %v372 = vld [vmem:[%s309] sm:$0x1]
        %v374 = vlaneseq
        %v375 = vshrl.u32 %v374, 7
        %v376 = vsub.s32 0, %v375
        %v377 = vrot.slane %v372, %v376
        %v395 = vunpack.c.l.b16 %v356
        %v396 = vunpack.c.l.b16 %v357
        %v397 = vunpack.c.l.b16 %v358
        %v398 = vunpack.c.l.b16 %v359
        %v399 = vunpack.c.l.b16 %v360
        %v400 = vunpack.c.l.b16 %v361
        %v401 = vunpack.c.l.b16 %v362
        %v402 = vunpack.c.l.b16 %v363
        %v403 = vunpack.c.l.b16 %v364
        %v404 = vunpack.c.l.b16 %v365
        %v405 = vunpack.c.l.b16 %v366
        %v406 = vunpack.c.l.b16 %v367
        %v407 = vunpack.c.l.b16 %v368
        %v408 = vunpack.c.l.b16 %v369
        %v409 = vunpack.c.l.b16 %v370
        %v410 = vunpack.c.l.b16 %v371
        %v411 = vpack.c.b16 %v396, %v395
        %v412 = vpack.c.b16 %v398, %v397
        %v413 = vpack.c.b16 %v400, %v399
        %v414 = vpack.c.b16 %v402, %v401
        %v415 = vpack.c.b16 %v404, %v403
        %v416 = vpack.c.b16 %v406, %v405
        %v417 = vpack.c.b16 %v408, %v407
        %v418 = vpack.c.b16 %v410, %v409
        %427 = vmatprep.subr.bf16.mxu0 0
        %428 = vmatpush1.bf16.msra.mxu0 %v418
        %429 = vmatprep.subr.bf16.mxu0 0
        %430 = vmatpush1.bf16.msra.mxu0 %v417
        %431 = vmatprep.subr.bf16.mxu0 0
        %432 = vmatpush1.bf16.msra.mxu0 %v416
        %433 = vmatprep.subr.bf16.mxu0 0
        %434 = vmatpush1.bf16.msra.mxu0 %v415
        %435 = vmatprep.subr.bf16.mxu0 0
        %436 = vmatpush1.bf16.msra.mxu0 %v414
        %437 = vmatprep.subr.bf16.mxu0 0
        %438 = vmatpush1.bf16.msra.mxu0 %v413
        %439 = vmatprep.subr.bf16.mxu0 0
        %440 = vmatpush1.bf16.msra.mxu0 %v412
        %441 = vmatprep.subr.bf16.mxu0 0
        %442 = vmatpush1.bf16.msra.mxu0 %v411
        %443 = vmatprep.subr.bf16.mxu0 0
        %444 = vmatpush2.bf16.msra.mxu0 0
        %445 = vmatprep.subr.bf16.mxu0 0
        %446 = vmatpush2.bf16.msra.mxu0 0
        %447 = vmatprep.subr.bf16.mxu0 0
        %448 = vmatpush2.bf16.msra.mxu0 0
        %449 = vmatprep.subr.bf16.mxu0 0
        %450 = vmatpush2.bf16.msra.mxu0 0
        %451 = vmatprep.subr.bf16.mxu0 0
        %452 = vmatpush2.bf16.msra.mxu0 0
        %453 = vmatprep.subr.bf16.mxu0 0
        %454 = vmatpush2.bf16.msra.mxu0 0
        %455 = vmatprep.subr.bf16.mxu0 0
        %456 = vmatpush2.bf16.msra.mxu0 0
        %457 = vmatprep.subr.bf16.mxu0 0
        %458 = vmatpush2.bf16.msra.mxu0 0
        %459 = vmatprep.mubr.bf16.mxu0 0
        %460 = vmatmul.mubr.bf16.gmra.mxu0 %v355
        %v461 = vpop.f32.mrf.mxu0
        %v462 = vadd.f32 %v377, %v461
        %v463 = vpop.f32.mrf.mxu0
        %v464 = vpop.f32.mrf.mxu0
        %v465 = vadd.f32 %v377, %v464
        %v466 = vpop.f32.mrf.mxu0
        %467 = vdwg.mxu0
        %v468 = vpack.c.bf16 %v465, %v462
        %v470 = vunpack.c.l.b16 %v468
        %v471 = vunpack.c.h.b16 %v468
        %v472 = vpack.c.b16 %v470, %v470
        %v473 = vpack.c.b16 %v471, %v471
        %476 = vst [vmem:[%s304] sm:$0xf] %v472
        %477 = vst [vmem:[%s304 + $0x4] sm:$0xf] %v473
        %s478 = sand.u32 %s176, 1
        %s479 = scalar_lea.sflag [#allocation4], %s478
        %s480 = sand.u32 %s176, 1
        %s481 = smul.addr %s480, 8
        %s482 = scalar_lea.vmem [#allocation7], %s481
        // Predicated region
        $region49: #{tpu_custom_call.1} parent=39 // pred_check
          %p483 = pneg %p186
        $region50: #{tpu_custom_call.1} parent=39 // pred_check_branch
          %485 = sbr.rel (%p483) target = $region52
        $region51: #{tpu_custom_call.1} parent=39 // pred_region
          %s486 = smul.u32 2, %s28
          %s488 = ssub.s32 128, 128
          %489 = vsyncadd %s479, %s488
          %s490 = smul.addr %s486, 3
          %s491 = sadd.s32 %s29, %s490
          %s492 = smul.addr %s491, 64
          %s493 = scalar_lea.hbm %s5, %s492
          %s494 = sshll.u32 %s482, 4
          %s495 = int_to_ptr.vmem [resolvable:$true] %s494
          %500 = dma.vmem_to_hbm [thread:$0]  %s495, 128, %s493, %s479, 64, 192, 4
        $region52: #{tpu_custom_call.1} parent=39 // pred_fallthru
          _
      $region40: #{tpu_custom_call.1} parent=5 // pred_fallthru
        _
      %p501 = scmp.le.s32.totalorder 2, %s18
      // Predicated region
      $region53: #{tpu_custom_call.1} parent=5 // pred_check
        %p502 = pneg %p501
      $region54: #{tpu_custom_call.1} parent=5 // pred_check_branch
        %504 = sbr.rel (%p502) target = $region56
      $region55: #{tpu_custom_call.1} parent=5 // pred_region
        %s505 = ssub.s32 %s18, 2
        // Predicated region
        $region57: #{tpu_custom_call.1} parent=55 // pred_check
          %p506 = pneg %p192
        $region58: #{tpu_custom_call.1} parent=55 // pred_check_branch
          %508 = sbr.rel (%p506) target = $region60
        $region59: #{tpu_custom_call.1} parent=55 // pred_region
          %s509 = sand.u32 %s177, 1
          %s510 = scalar_lea.sflag [#allocation4], %s509
          %s511 = sand.u32 %s177, 1
          %s512 = smul.addr %s511, 8
          %s513 = scalar_lea.vmem [#allocation7], %s512
          %514 = dma.done %s510, 128
        $region60: #{tpu_custom_call.1} parent=55 // pred_fallthru
          _
      $region56: #{tpu_custom_call.1} parent=5 // pred_fallthru
        _
    $region6: #{tpu_custom_call.1} parent=1 // loop_footer
      %s22 = sadd.s32 1, %s18
    $region7: #{tpu_custom_call.1} parent=1 // loop_footer_branch
      %17 = sbr.rel target = $region3
    $region8: #{tpu_custom_call.1} parent=1 // loop_exit
      _
    %515 = vsyncpa [#allocation3], 1
    %s516 = scalar_lea.sflag [#allocation3], 1
    %517 = vsyncpa %s516, 1
    %518 = vsyncpa [#allocation6], 1
    %s519 = scalar_lea.sflag [#allocation6], 1
    %520 = vsyncpa %s519, 1
    %521 = vsyncpa [#allocation4], 1
    %s522 = scalar_lea.sflag [#allocation4], 1
    %523 = vsyncpa %s522, 1

</llo_original>
